<compile_context>
chip_gen: v5e
topology: v5e:2x2
jax: 0.10.0
libtpu: 0.0.40
codegen_flags: <defaults>
</compile_context>

<pallas_src>
import functools

import jax
import jax.numpy as jnp
from jax.experimental import pallas as pl
from jax.experimental.pallas import tpu as pltpu


# ---------------------------------------------------------------------------
# Hardware-aware sizing helpers.
# ---------------------------------------------------------------------------

def _hw_config():
    """Returns (max_block_bytes, vmem_limit_cap, min_grid_steps, old_gen_vpu)."""
    kind = ""
    try:
        kind = jax.devices()[0].device_kind.lower()
    except Exception:
        pass
    vmem = None
    try:
        vmem = int(pltpu.get_tpu_info().vmem_capacity_bytes)
    except Exception:
        vmem = None
    if vmem is None:
        # v2..v6 TensorCores have 128 MiB VMEM; v7x has 64 MiB per core.
        vmem = (64 << 20) if ("7" in kind) else (128 << 20)
    if vmem >= (96 << 20):
        max_block_bytes = 20 << 20     # big tiles: fewer steps, bigger DMAs
        vmem_cap = 100 << 20
        min_steps = 2                  # single TensorCore per chip
    else:
        max_block_bytes = 8 << 20      # v7x-like: 64 MiB VMEM, 2 TensorCores
        vmem_cap = 48 << 20
        min_steps = 4                  # >= 2 pipelined steps per core
    # v5e and older have no native bf16 VPU path: gate-multiply in f32 there.
    old_gen = any(t in kind for t in ("v2", "v3", "v4", "v5"))
    return max_block_bytes, vmem_cap, min_steps, old_gen


def _round_down_128(n):
    return (n // 128) * 128


def _choose_b_tile(B, slab_bytes, max_block_bytes, min_steps):
    """Largest batch tile that fits the block budget while still producing
    enough (and, on megacore parts, preferably even) grid steps."""
    bt_fit = max(1, min(B, max_block_bytes // max(slab_bytes, 1)))
    best, best_key = 1, None
    for bt in range(1, bt_fit + 1):
        steps = pl.cdiv(B, bt)
        key = (
            steps >= min_steps,                            # pipelining / both TCs busy
            (steps % 2 == 0) if min_steps >= 4 else True,  # no idle-core tail on v7x
            bt,                                            # then: biggest tile
        )
        if best_key is None or key > best_key:
            best, best_key = bt, key
    return best


def _choose_hw_tile(HW, row_bytes, max_block_bytes, min_steps, n_batch_steps):
    """Spatial tile for the two-phase path: a multiple of 128, or the full HW."""
    if HW <= 128:
        return HW
    max_tile_lanes = max_block_bytes // max(row_bytes, 1)
    need_nhw = max(1, pl.cdiv(min_steps, max(n_batch_steps, 1)))
    if need_nhw == 1 and HW <= max_tile_lanes:
        return HW                                   # single lane-dense spatial step
    max_tile = max(128, _round_down_128(max_tile_lanes))
    per_step = max(1, HW // need_nhw)
    tile_for_steps = max(128, _round_down_128(per_step)) if per_step >= 128 else 128
    hw_tile = min(max_tile, tile_for_steps)
    return HW if hw_tile >= HW else hw_tile


# ---------------------------------------------------------------------------
# Kernels.
# ---------------------------------------------------------------------------

def _excite(pooled_f32, w1t, b1, w2t, b2):
    """(Bt, C) -> (Bt, C): two folded-BN 1x1 convs with ReLU then sigmoid."""
    h = jnp.dot(pooled_f32, w1t, preferred_element_type=jnp.float32) + b1
    h = jnp.maximum(h, 0.0)
    s = jnp.dot(h, w2t, preferred_element_type=jnp.float32) + b2
    return jax.nn.sigmoid(s)


def _se_fused_kernel(x_ref, w1t_ref, b1_ref, w2t_ref, b2_ref, o_ref, *,
                     inv_hw, gate_in_f32):
    # x block: (b_tile, C, HW) in the input's native dtype (read once from HBM).
    x = x_ref[...]
    pooled = jnp.sum(x.astype(jnp.float32), axis=-1) * inv_hw          # (Bt, C)
    s = _excite(pooled, w1t_ref[...], b1_ref[...], w2t_ref[...], b2_ref[...])
    if gate_in_f32:
        y = x.astype(jnp.float32) * s[:, :, None]
    else:
        y = x * s.astype(x.dtype)[:, :, None]
    o_ref[...] = y.astype(o_ref.dtype)


def _se_pool_excite_kernel(x_ref, w1t_ref, b1_ref, w2t_ref, b2_ref, s_ref,
                           acc_ref, *, inv_hw, hw, hw_tile):
    # Phase A: global average pool (reduction over the HW grid axis) + excite.
    hw_i = pl.program_id(1)

    @pl.when(hw_i == 0)
    def _():
        acc_ref[...] = jnp.zeros_like(acc_ref)

    x = x_ref[...].astype(jnp.float32)            # (1, C, hw_tile)
    if hw % hw_tile != 0:                         # mask garbage lanes of the tail block
        lane = jax.lax.broadcasted_iota(jnp.int32, x.shape, 2) + hw_i * hw_tile
        x = jnp.where(lane < hw, x, 0.0)
    acc_ref[...] += jnp.sum(x, axis=-1)           # (1, C) f32 accumulator

    @pl.when(hw_i == pl.num_programs(1) - 1)
    def _():
        pooled = acc_ref[...] * inv_hw
        s = _excite(pooled, w1t_ref[...], b1_ref[...], w2t_ref[...], b2_ref[...])
        s_ref[...] = s[:, :, None]                # (1, C, 1)


def _se_rescale_kernel(x_ref, s_ref, o_ref, *, gate_in_f32):
    # Phase B: streaming channel-wise rescale, tiled over (B, HW).
    x = x_ref[...]                                # (1, C, hw_tile)
    s = s_ref[...]                                # (1, C, 1) f32
    if gate_in_f32:
        y = x.astype(jnp.float32) * s
    else:
        y = x * s.astype(x.dtype)
    o_ref[...] = y.astype(o_ref.dtype)


# ---------------------------------------------------------------------------
# Wrapper.
# ---------------------------------------------------------------------------

def se_module(x_nchw, w1, b1, w2, b2, *, force_path=None, force_hw_tile=None):
    """SE forward: y = x * sigmoid(excite(mean_{H,W}(x))).

    x_nchw: (B, C, H, W)
    w1: (Cr, C), b1: (Cr,)   -- first 1x1 conv with BN1 folded in
    w2: (C, Cr), b2: (C,)    -- second 1x1 conv with BN2 folded in
    force_path / force_hw_tile: testing hooks only ("fused" / "two_phase").
    """
    B, C, H, W = x_nchw.shape
    Cr = w1.shape[0]
    HW = H * W
    dtype = x_nchw.dtype
    itemsize = jnp.dtype(dtype).itemsize

    max_block_bytes, vmem_cap, min_steps, old_gen = _hw_config()
    gate_in_f32 = bool(old_gen) and dtype != jnp.float32

    x = x_nchw.reshape(B, C, HW)        # free reshape: no pad, no extra HBM pass
    slab_bytes = C * HW * itemsize      # one batch element
    total_bytes = B * slab_bytes
    inv_hw = float(1.0 / HW)

    # Kernel-friendly layout: right-multiply matrices + row-vector biases.
    w1t = w1.T.astype(jnp.float32)              # (C, Cr)
    w2t = w2.T.astype(jnp.float32)              # (Cr, C)
    b1r = b1.reshape(1, Cr).astype(jnp.float32)
    b2r = b2.reshape(1, C).astype(jnp.float32)
    w_bytes = 4 * (2 * C * Cr + C + Cr)

    # Two-phase when a single-batch slab can't be a block, or when B is too
    # small to form enough grid steps for a reasonably large tensor.
    two_phase = (slab_bytes > max_block_bytes) or (
        B < min_steps and HW > 128 and total_bytes > (2 << 20))
    if force_path == "fused":
        two_phase = False
    elif force_path == "two_phase":
        two_phase = True

    if not two_phase:
        # ------------------------- fused single-pass -------------------------
        b_tile = _choose_b_tile(B, slab_bytes, max_block_bytes, min_steps)
        nb = pl.cdiv(B, b_tile)
        block_bytes = b_tile * slab_bytes
        vmem_limit = int(min(max(4 * block_bytes + 2 * w_bytes + (2 << 20),
                                 16 << 20), vmem_cap))
        kernel = functools.partial(_se_fused_kernel, inv_hw=inv_hw,
                                   gate_in_f32=gate_in_f32)
        out = pl.pallas_call(
            kernel,
            out_shape=jax.ShapeDtypeStruct((B, C, HW), dtype),
            grid_spec=pltpu.PrefetchScalarGridSpec(
                num_scalar_prefetch=0,
                grid=(nb,),
                in_specs=[
                    pl.BlockSpec((b_tile, C, HW), lambda b: (b, 0, 0)),
                    pl.BlockSpec((C, Cr), lambda b: (0, 0)),
                    pl.BlockSpec((1, Cr), lambda b: (0, 0)),
                    pl.BlockSpec((Cr, C), lambda b: (0, 0)),
                    pl.BlockSpec((1, C), lambda b: (0, 0)),
                ],
                out_specs=pl.BlockSpec((b_tile, C, HW), lambda b: (b, 0, 0)),
            ),
            compiler_params=pltpu.CompilerParams(
                dimension_semantics=("parallel",),
                vmem_limit_bytes=vmem_limit,
            ),
            cost_estimate=pl.CostEstimate(
                flops=2 * B * C * HW + 4 * B * C * Cr,
                transcendentals=B * C,
                bytes_accessed=2 * B * C * HW * itemsize + w_bytes,
            ),
        )(x, w1t, b1r, w2t, b2r)
        return out.reshape(B, C, H, W)

    # --------------------------- two-phase fallback ---------------------------
    # Phase A: pool + excite -> s[B, C, 1] (f32); HW is the reduction grid axis.
    hw_tile = force_hw_tile if force_hw_tile is not None else _choose_hw_tile(
        HW, C * itemsize, max_block_bytes, min_steps, B)
    nhw = pl.cdiv(HW, hw_tile)
    block_hw = C * hw_tile * itemsize
    vmem_a = int(min(max(3 * block_hw + 2 * w_bytes + (4 << 20), 16 << 20), vmem_cap))
    kernel_a = functools.partial(_se_pool_excite_kernel, inv_hw=inv_hw,
                                 hw=HW, hw_tile=hw_tile)
    s = pl.pallas_call(
        kernel_a,
        out_shape=jax.ShapeDtypeStruct((B, C, 1), jnp.float32),
        grid_spec=pltpu.PrefetchScalarGridSpec(
            num_scalar_prefetch=0,
            grid=(B, nhw),
            in_specs=[
                pl.BlockSpec((1, C, hw_tile), lambda b, h: (b, 0, h)),
                pl.BlockSpec((C, Cr), lambda b, h: (0, 0)),
                pl.BlockSpec((1, Cr), lambda b, h: (0, 0)),
                pl.BlockSpec((Cr, C), lambda b, h: (0, 0)),
                pl.BlockSpec((1, C), lambda b, h: (0, 0)),
            ],
            out_specs=pl.BlockSpec((1, C, 1), lambda b, h: (b, 0, 0)),
            scratch_shapes=[pltpu.VMEM((1, C), jnp.float32)],
        ),
        compiler_params=pltpu.CompilerParams(
            dimension_semantics=("parallel", "arbitrary"),
            vmem_limit_bytes=vmem_a,
        ),
        cost_estimate=pl.CostEstimate(
            flops=B * C * HW + 4 * B * C * Cr,
            transcendentals=B * C,
            bytes_accessed=B * C * HW * itemsize + w_bytes + 4 * B * C,
        ),
    )(x, w1t, b1r, w2t, b2r)

    # Phase B: rescale; both grid axes parallel (megacore-shardable, pipelined).
    vmem_b = int(min(max(4 * block_hw + (4 << 20), 16 << 20), vmem_cap))
    kernel_b = functools.partial(_se_rescale_kernel, gate_in_f32=gate_in_f32)
    out = pl.pallas_call(
        kernel_b,
        out_shape=jax.ShapeDtypeStruct((B, C, HW), dtype),
        grid_spec=pltpu.PrefetchScalarGridSpec(
            num_scalar_prefetch=0,
            grid=(B, nhw),
            in_specs=[
                pl.BlockSpec((1, C, hw_tile), lambda b, h: (b, 0, h)),
                pl.BlockSpec((1, C, 1), lambda b, h: (b, 0, 0)),
            ],
            out_specs=pl.BlockSpec((1, C, hw_tile), lambda b, h: (b, 0, h)),
        ),
        compiler_params=pltpu.CompilerParams(
            dimension_semantics=("parallel", "parallel"),
            vmem_limit_bytes=vmem_b,
        ),
        cost_estimate=pl.CostEstimate(
            flops=B * C * HW,
            transcendentals=0,
            bytes_accessed=2 * B * C * HW * itemsize + 4 * B * C,
        ),
    )(x, s)
    return out.reshape(B, C, H, W)


# ---------------------------------------------------------------------------
# Reference + test.
# ---------------------------------------------------------------------------

def _fold_bn(w, gamma, beta, mean, var, eps=1e-5):
    """Fold eval-mode BatchNorm into a bias-free 1x1 conv weight."""
    inv_std = gamma / jnp.sqrt(var + eps)
    w_f = w * inv_std[:, None]
    b_f = beta - mean * inv_std
    return w_f.astype(jnp.float32), b_f.astype(jnp.float32)


def _reference(x, w1, b1, w2, b2):
    pooled = jnp.mean(x, axis=(2, 3))                        # (B, C)
    h = jnp.maximum(pooled @ w1.T + b1[None, :], 0.0)        # (B, Cr)
    s = jax.nn.sigmoid(h @ w2.T + b2[None, :])               # (B, C)
    return x * s[:, :, None, None]


def _make_case(key, B, C, H, W, reduction=4):
    Cr = C // reduction
    ks = jax.random.split(key, 11)
    x = jax.random.normal(ks[0], (B, C, H, W), dtype=jnp.float32)
    w1_raw = jax.random.normal(ks[1], (Cr, C), dtype=jnp.float32) * 0.3
    w2_raw = jax.random.normal(ks[2], (C, Cr), dtype=jnp.float32) * 0.3
    g1 = 1.0 + 0.1 * jax.random.normal(ks[3], (Cr,), dtype=jnp.float32)
    be1 = 0.1 * jax.random.normal(ks[4], (Cr,), dtype=jnp.float32)
    m1 = 0.1 * jax.random.normal(ks[5], (Cr,), dtype=jnp.float32)
    v1 = jnp.abs(jax.random.normal(ks[6], (Cr,), dtype=jnp.float32)) + 0.5
    g2 = 1.0 + 0.1 * jax.random.normal(ks[7], (C,), dtype=jnp.float32)
    be2 = 0.1 * jax.random.normal(ks[8], (C,), dtype=jnp.float32)
    m2 = 0.1 * jax.random.normal(ks[9], (C,), dtype=jnp.float32)
    v2 = jnp.abs(jax.random.normal(ks[10], (C,), dtype=jnp.float32)) + 0.5
    w1, b1 = _fold_bn(w1_raw, g1, be1, m1, v1)
    w2, b2 = _fold_bn(w2_raw, g2, be2, m2, v2)
    return x, w1, b1, w2, b2


if __name__ == "__main__":
    keys = jax.random.split(jax.random.PRNGKey(0), 2)

    # Case 1: SeModule(in_size=16) on (2, 16, 16, 16) -- default (fused) path.
    x, w1, b1, w2, b2 = _make_case(keys[0], 2, 16, 16, 16)
    y_ref = _reference(x, w1, b1, w2, b2)
    y = jax.block_until_ready(se_module(x, w1, b1, w2, b2))
    assert jnp.allclose(y, y_ref, atol=1e-3, rtol=1e-3), "fused path mismatch"

    # Case 2: same inputs through the two-phase (pool+excite / rescale) path.
    y2 = jax.block_until_ready(se_module(x, w1, b1, w2, b2, force_path="two_phase"))
    assert jnp.allclose(y2, y_ref, atol=1e-3, rtol=1e-3), "two-phase path mismatch"

    # Case 3: awkward shapes (B=3, HW=144): partial batch-tail block in the fused
    # path and masked spatial-tail block (hw_tile=128 over HW=144) in two-phase.
    x3, w1_3, b1_3, w2_3, b2_3 = _make_case(keys[1], 3, 16, 12, 12)
    y3_ref = _reference(x3, w1_3, b1_3, w2_3, b2_3)
    y3a = jax.block_until_ready(
        se_module(x3, w1_3, b1_3, w2_3, b2_3, force_path="fused"))
    assert jnp.allclose(y3a, y3_ref, atol=1e-3, rtol=1e-3), "fused tail mismatch"
    y3b = jax.block_until_ready(
        se_module(x3, w1_3, b1_3, w2_3, b2_3,
                  force_path="two_phase", force_hw_tile=128))
    assert jnp.allclose(y3b, y3_ref, atol=1e-3, rtol=1e-3), "two-phase tail mismatch"

    print("KERNEL_OK")
</pallas_src>

<mosaic_0001>
module attributes {stable_mosaic.version = 11 : i64} {
  func.func @_se_fused_kernel(%arg0: i32, %arg1: memref<1x16x256xf32, #tpu.memory_space<vmem>>, %arg2: memref<16x4xf32, #tpu.memory_space<vmem>>, %arg3: memref<1x4xf32, #tpu.memory_space<vmem>>, %arg4: memref<4x16xf32, #tpu.memory_space<vmem>>, %arg5: memref<1x16xf32, #tpu.memory_space<vmem>>, %arg6: memref<1x16x256xf32, #tpu.memory_space<vmem>>) attributes {dimension_semantics = [#tpu.dimension_semantics<parallel>], iteration_bounds = array<i64: 2>, scalar_prefetch = 0 : i64, scratch_operands = 0 : i64, tpu.core_type = #tpu.core_type<tc>, window_params = [{transform_indices = @transform_0, window_bounds = array<i64: 1, 16, 256>}, {pipeline_mode = #tpu.pipeline_mode<synchronous>, transform_indices = @transform_1, window_bounds = array<i64: 16, 4>}, {pipeline_mode = #tpu.pipeline_mode<synchronous>, transform_indices = @transform_2, window_bounds = array<i64: 1, 4>}, {pipeline_mode = #tpu.pipeline_mode<synchronous>, transform_indices = @transform_3, window_bounds = array<i64: 4, 16>}, {pipeline_mode = #tpu.pipeline_mode<synchronous>, transform_indices = @transform_4, window_bounds = array<i64: 1, 16>}, {transform_indices = @transform_5, window_bounds = array<i64: 1, 16, 256>}]} {
    %c0 = arith.constant 0 : index
    %c0_0 = arith.constant 0 : index
    %c0_1 = arith.constant 0 : index
    %0 = vector.load %arg1[%c0, %c0_0, %c0_1] : memref<1x16x256xf32, #tpu.memory_space<vmem>>, vector<1x16x256xf32>
    %cst = arith.constant dense<0.000000e+00> : vector<1x16xf32>
    %1 = vector.multi_reduction <add>, %0, %cst [2] : vector<1x16x256xf32> to vector<1x16xf32>
    %cst_2 = arith.constant 3.906250e-03 : f32
    %2 = vector.broadcast %cst_2 : f32 to vector<1x16xf32>
    %3 = arith.mulf %1, %2 : vector<1x16xf32>
    %c0_3 = arith.constant 0 : index
    %c0_4 = arith.constant 0 : index
    %4 = vector.load %arg2[%c0_3, %c0_4] : memref<16x4xf32, #tpu.memory_space<vmem>>, vector<16x4xf32>
    %c0_5 = arith.constant 0 : index
    %c0_6 = arith.constant 0 : index
    %5 = vector.load %arg3[%c0_5, %c0_6] : memref<1x4xf32, #tpu.memory_space<vmem>>, vector<1x4xf32>
    %c0_7 = arith.constant 0 : index
    %c0_8 = arith.constant 0 : index
    %6 = vector.load %arg4[%c0_7, %c0_8] : memref<4x16xf32, #tpu.memory_space<vmem>>, vector<4x16xf32>
    %c0_9 = arith.constant 0 : index
    %c0_10 = arith.constant 0 : index
    %7 = vector.load %arg5[%c0_9, %c0_10] : memref<1x16xf32, #tpu.memory_space<vmem>>, vector<1x16xf32>
    %cst_11 = arith.constant dense<0.000000e+00> : vector<1x4xf32>
    %8 = tpu.matmul %3, %4, %cst_11 {dimension_numbers = #tpu.dot_dimension_numbers<[1], [0], [0], [1], [0, 0, 1, 1], [], []>} : vector<1x16xf32>, vector<16x4xf32>, vector<1x4xf32> -> vector<1x4xf32>
    %9 = arith.addf %8, %5 : vector<1x4xf32>
    %cst_12 = arith.constant 0.000000e+00 : f32
    %10 = vector.broadcast %cst_12 : f32 to vector<1x4xf32>
    %11 = arith.maximumf %9, %10 : vector<1x4xf32>
    %cst_13 = arith.constant dense<0.000000e+00> : vector<1x16xf32>
    %12 = tpu.matmul %11, %6, %cst_13 {dimension_numbers = #tpu.dot_dimension_numbers<[1], [0], [0], [1], [0, 0, 1, 1], [], []>} : vector<1x4xf32>, vector<4x16xf32>, vector<1x16xf32> -> vector<1x16xf32>
    %13 = arith.addf %12, %7 : vector<1x16xf32>
    %14 = arith.negf %13 : vector<1x16xf32>
    %15 = math.exp %14 : vector<1x16xf32>
    %cst_14 = arith.constant 1.000000e+00 : f32
    %16 = vector.broadcast %cst_14 : f32 to vector<1x16xf32>
    %17 = arith.addf %16, %15 : vector<1x16xf32>
    %18 = arith.divf %16, %17 : vector<1x16xf32>
    %19 = vector.shape_cast %18 : vector<1x16xf32> to vector<1x16x1xf32>
    %20 = vector.broadcast %19 : vector<1x16x1xf32> to vector<1x16x256xf32>
    %21 = arith.mulf %0, %20 : vector<1x16x256xf32>
    %c0_15 = arith.constant 0 : index
    %c0_16 = arith.constant 0 : index
    %c0_17 = arith.constant 0 : index
    %22 = vector.load %arg6[%c0_15, %c0_16, %c0_17] : memref<1x16x256xf32, #tpu.memory_space<vmem>>, vector<1x16x256xf32>
    tpu.vector_store %arg6[%c0_15, %c0_16, %c0_17], %21 {strides = array<i32>} : memref<1x16x256xf32, #tpu.memory_space<vmem>>, vector<1x16x256xf32>,
    return
  }
  func.func @transform_0(%arg0: i32) -> (i32, i32, i32) {
    %c0_i32 = arith.constant 0 : i32
    %c0_i32_0 = arith.constant 0 : i32
    %c0_i32_1 = arith.constant 0 : i32
    return %arg0, %c0_i32, %c0_i32_0 : i32, i32, i32
  }
  func.func @transform_1(%arg0: i32) -> (i32, i32) {
    %c0_i32 = arith.constant 0 : i32
    %c0_i32_0 = arith.constant 0 : i32
    %c0_i32_1 = arith.constant 0 : i32
    return %c0_i32, %c0_i32_0 : i32, i32
  }
  func.func @transform_2(%arg0: i32) -> (i32, i32) {
    %c0_i32 = arith.constant 0 : i32
    %c0_i32_0 = arith.constant 0 : i32
    %c0_i32_1 = arith.constant 0 : i32
    return %c0_i32, %c0_i32_0 : i32, i32
  }
  func.func @transform_3(%arg0: i32) -> (i32, i32) {
    %c0_i32 = arith.constant 0 : i32
    %c0_i32_0 = arith.constant 0 : i32
    %c0_i32_1 = arith.constant 0 : i32
    return %c0_i32, %c0_i32_0 : i32, i32
  }
  func.func @transform_4(%arg0: i32) -> (i32, i32) {
    %c0_i32 = arith.constant 0 : i32
    %c0_i32_0 = arith.constant 0 : i32
    %c0_i32_1 = arith.constant 0 : i32
    return %c0_i32, %c0_i32_0 : i32, i32
  }
  func.func @transform_5(%arg0: i32) -> (i32, i32, i32) {
    %c0_i32 = arith.constant 0 : i32
    %c0_i32_0 = arith.constant 0 : i32
    %c0_i32_1 = arith.constant 0 : i32
    return %arg0, %c0_i32, %c0_i32_0 : i32, i32, i32
  }
}

</mosaic_0001>

<llo_original>
// kernel: tpu_custom_call.1
$region0: #{tpu_custom_call.1}
  #allocation0 [shape = 'u32[]', space=smem, size = 0x4, offset = 0x4, fixed_abs, tag = 'smem constant byte address 0x4 - core index']
  #allocation1 [shape = 'u32[72,128]{1,0:T(1,128)}', space=vmem, size = 0x9000, scoped, tag = 'internal scratch']
  %s0 = inlined_call_operand.hbm [shape: f32[2,16,256], index: 0, kind: input, shape index: {}]
  %s1 = inlined_call_operand.vmem [shape: f32[16,4], index: 1, kind: input, shape index: {}]
  %s2 = inlined_call_operand.vmem [shape: f32[1,4], index: 2, kind: input, shape index: {}]
  %s3 = inlined_call_operand.vmem [shape: f32[4,16], index: 3, kind: input, shape index: {}]
  %s4 = inlined_call_operand.vmem [shape: f32[1,16], index: 4, kind: input, shape index: {}]
  %s5 = inlined_call_operand.hbm [shape: f32[2,16,256], index: 5, kind: output, shape index: {}]
  %s6 = sld [smem:[#allocation0]]
  $region57: #{tpu_custom_call.1} parent=0
    _
  %s8 = ssub.s32 1, %s6
  %s9 = scalar_select 0, %s8, %s6
  $region1: #{tpu_custom_call.1} parent=0
    #allocation2 [shape = 'u8[32768]{0}', space=vmem, size = 0x8000, scoped, tag = 'input window, operand 0']
    #allocation3 [shape = 's32[2]{0}', space=sflag, size = 0x8, scoped, tag = 'scoped memory for tpu_custom_call.1']
    #allocation4 [shape = 's32[2]{0}', space=sflag, size = 0x8, scoped, tag = 'scoped memory for tpu_custom_call.1']
    #allocation5 [shape = 'u8[32768]{0}', space=vmem, size = 0x8000, scoped, tag = 'output window, operand 0']
    %10 = vsyncpa [#allocation3], 0
    %s11 = scalar_lea.sflag [#allocation3], 1
    %12 = vsyncpa %s11, 0
    %13 = vsyncpa [#allocation4], 0
    %s14 = scalar_lea.sflag [#allocation4], 1
    %15 = vsyncpa %s14, 0
    loop: start=0, step=1, limit=4
    $region2: #{tpu_custom_call.1} parent=1 // loop_pre_header
      _
    $region3: #{tpu_custom_call.1} parent=1 // loop_header
      %s17 = sphi 0, %s21
      %p18 = scmp.ge.s32.totalorder %s17, 4
      %s27 = sphi 0, %s29
      %s30 = sphi 0, %s27
      %s31 = sphi 0, %s30
      %s47 = sphi 0, %s31
      %s51 = sphi 0, %s51
      %s53 = sphi 0, %s51
      %s54 = sphi 0, %s53
      %s68 = sphi 0, %s54
      %s72 = sphi 0, %s72
      %s74 = sphi 0, %s72
      %s75 = sphi 0, %s74
      %s89 = sphi 0, %s75
      %s93 = sphi 0, %s93
      %s95 = sphi 0, %s93
      %s96 = sphi 0, %s95
      %s110 = sphi 0, %s96
      %s114 = sphi 0, %s114
      %s116 = sphi 0, %s114
      %s117 = sphi 0, %s116
      %s131 = sphi 0, %s117
      %s137 = sphi 0, %s139
      %s140 = sphi 0, %s137
      %s141 = sphi 0, %s140
      %s157 = sphi 0, %s141
    $region4: #{tpu_custom_call.1} parent=1 // loop_header_branch
      %20 = sbr.rel (%p18) target = $region8
    $region5: #{tpu_custom_call.1} parent=1 // loop_body
      %s22 = ssub.s32 %s17, 1
      %s23 = ssub.s32 %s17, 2
      %s24 = sadd.s32 %s17, 1
      %s25 = ssub.s32 %s17, %s24
      %p26 = scmp.eq.s32.totalorder %s25, 0
      %s28 = sadd.s32 %s27, 1
      %s29 = scalar_select %p26, %s27, %s28
      %p32 = pneg %p26
      %p33 = scmp.eq.s32.totalorder %s17, 1
      %p34 = por %p32, %p33
      %p35 = scmp.ne.s32.totalorder %s27, %s30
      %p36 = scmp.eq.s32.totalorder %s17, 0
      %p37 = por %p35, %p36
      %p38 = scmp.ne.s32.totalorder %s27, %s30
      %p39 = scmp.eq.s32.totalorder %s22, 1
      %p40 = por %p38, %p39
      %p41 = scmp.ne.s32.totalorder %s30, %s31
      %p42 = scmp.eq.s32.totalorder %s22, 0
      %p43 = por %p41, %p42
      %p44 = scmp.ne.s32.totalorder %s30, %s31
      %p45 = scmp.eq.s32.totalorder %s23, 1
      %p46 = por %p44, %p45
      %p48 = scmp.ne.s32.totalorder %s31, %s47
      %p49 = scmp.eq.s32.totalorder %s23, 0
      %p50 = por %p48, %p49
      %s52 = sadd.s32 %s51, 1
      %p55 = scmp.eq.s32.totalorder %s17, 1
      %p56 = scmp.ne.s32.totalorder %s51, %s53
      %p57 = scmp.eq.s32.totalorder %s17, 0
      %p58 = por %p56, %p57
      %p59 = scmp.ne.s32.totalorder %s51, %s53
      %p60 = scmp.eq.s32.totalorder %s22, 1
      %p61 = por %p59, %p60
      %p62 = scmp.ne.s32.totalorder %s53, %s54
      %p63 = scmp.eq.s32.totalorder %s22, 0
      %p64 = por %p62, %p63
      %p65 = scmp.ne.s32.totalorder %s53, %s54
      %p66 = scmp.eq.s32.totalorder %s23, 1
      %p67 = por %p65, %p66
      %p69 = scmp.ne.s32.totalorder %s54, %s68
      %p70 = scmp.eq.s32.totalorder %s23, 0
      %p71 = por %p69, %p70
      %s73 = sadd.s32 %s72, 1
      %p76 = scmp.eq.s32.totalorder %s17, 1
      %p77 = scmp.ne.s32.totalorder %s72, %s74
      %p78 = scmp.eq.s32.totalorder %s17, 0
      %p79 = por %p77, %p78
      %p80 = scmp.ne.s32.totalorder %s72, %s74
      %p81 = scmp.eq.s32.totalorder %s22, 1
      %p82 = por %p80, %p81
      %p83 = scmp.ne.s32.totalorder %s74, %s75
      %p84 = scmp.eq.s32.totalorder %s22, 0
      %p85 = por %p83, %p84
      %p86 = scmp.ne.s32.totalorder %s74, %s75
      %p87 = scmp.eq.s32.totalorder %s23, 1
      %p88 = por %p86, %p87
      %p90 = scmp.ne.s32.totalorder %s75, %s89
      %p91 = scmp.eq.s32.totalorder %s23, 0
      %p92 = por %p90, %p91
      %s94 = sadd.s32 %s93, 1
      %p97 = scmp.eq.s32.totalorder %s17, 1
      %p98 = scmp.ne.s32.totalorder %s93, %s95
      %p99 = scmp.eq.s32.totalorder %s17, 0
      %p100 = por %p98, %p99
      %p101 = scmp.ne.s32.totalorder %s93, %s95
      %p102 = scmp.eq.s32.totalorder %s22, 1
      %p103 = por %p101, %p102
      %p104 = scmp.ne.s32.totalorder %s95, %s96
      %p105 = scmp.eq.s32.totalorder %s22, 0
      %p106 = por %p104, %p105
      %p107 = scmp.ne.s32.totalorder %s95, %s96
      %p108 = scmp.eq.s32.totalorder %s23, 1
      %p109 = por %p107, %p108
      %p111 = scmp.ne.s32.totalorder %s96, %s110
      %p112 = scmp.eq.s32.totalorder %s23, 0
      %p113 = por %p111, %p112
      %s115 = sadd.s32 %s114, 1
      %p118 = scmp.eq.s32.totalorder %s17, 1
      %p119 = scmp.ne.s32.totalorder %s114, %s116
      %p120 = scmp.eq.s32.totalorder %s17, 0
      %p121 = por %p119, %p120
      %p122 = scmp.ne.s32.totalorder %s114, %s116
      %p123 = scmp.eq.s32.totalorder %s22, 1
      %p124 = por %p122, %p123
      %p125 = scmp.ne.s32.totalorder %s116, %s117
      %p126 = scmp.eq.s32.totalorder %s22, 0
      %p127 = por %p125, %p126
      %p128 = scmp.ne.s32.totalorder %s116, %s117
      %p129 = scmp.eq.s32.totalorder %s23, 1
      %p130 = por %p128, %p129
      %p132 = scmp.ne.s32.totalorder %s117, %s131
      %p133 = scmp.eq.s32.totalorder %s23, 0
      %p134 = por %p132, %p133
      %s135 = ssub.s32 %s17, %s24
      %p136 = scmp.eq.s32.totalorder %s135, 0
      %s138 = sadd.s32 %s137, 1
      %s139 = scalar_select %p136, %s137, %s138
      %p142 = pneg %p136
      %p143 = scmp.eq.s32.totalorder %s17, 1
      %p144 = por %p142, %p143
      %p145 = scmp.ne.s32.totalorder %s137, %s140
      %p146 = scmp.eq.s32.totalorder %s17, 0
      %p147 = por %p145, %p146
      %p148 = scmp.ne.s32.totalorder %s137, %s140
      %p149 = scmp.eq.s32.totalorder %s22, 1
      %p150 = por %p148, %p149
      %p151 = scmp.ne.s32.totalorder %s140, %s141
      %p152 = scmp.eq.s32.totalorder %s22, 0
      %p153 = por %p151, %p152
      %p154 = scmp.ne.s32.totalorder %s140, %s141
      %p155 = scmp.eq.s32.totalorder %s23, 1
      %p156 = por %p154, %p155
      %p158 = scmp.ne.s32.totalorder %s141, %s157
      %p159 = scmp.eq.s32.totalorder %s23, 0
      %p160 = por %p158, %p159
      %p161 = scmp.le.s32.totalorder 1, %s17
      %p162 = scmp.lt.s32.totalorder %s17, 3
      %p163 = pnand %p161, %p162
      %p164 = pneg %p163
      // Predicated region
      $region9: #{tpu_custom_call.1} parent=5 // pred_check
        _
      $region10: #{tpu_custom_call.1} parent=5 // pred_check_branch
        %166 = sbr.rel (%p163) target = $region12
      $region11: #{tpu_custom_call.1} parent=5 // pred_region
        %s167 = ssub.s32 %s17, 1
        // Predicated region
        $region13: #{tpu_custom_call.1} parent=11 // pred_check
          %p168 = pneg %p64
        $region14: #{tpu_custom_call.1} parent=11 // pred_check_branch
          %170 = sbr.rel (%p168) target = $region16
        $region15: #{tpu_custom_call.1} parent=11 // pred_region
          _
        $region16: #{tpu_custom_call.1} parent=11 // pred_fallthru
          _
        // Predicated region
        $region17: #{tpu_custom_call.1} parent=11 // pred_check
          %p171 = pneg %p85
        $region18: #{tpu_custom_call.1} parent=11 // pred_check_branch
          %173 = sbr.rel (%p171) target = $region20
        $region19: #{tpu_custom_call.1} parent=11 // pred_region
          _
        $region20: #{tpu_custom_call.1} parent=11 // pred_fallthru
          _
        // Predicated region
        $region21: #{tpu_custom_call.1} parent=11 // pred_check
          %p174 = pneg %p106
        $region22: #{tpu_custom_call.1} parent=11 // pred_check_branch
          %176 = sbr.rel (%p174) target = $region24
        $region23: #{tpu_custom_call.1} parent=11 // pred_region
          _
        $region24: #{tpu_custom_call.1} parent=11 // pred_fallthru
          _
        // Predicated region
        $region25: #{tpu_custom_call.1} parent=11 // pred_check
          %p177 = pneg %p127
        $region26: #{tpu_custom_call.1} parent=11 // pred_check_branch
          %179 = sbr.rel (%p177) target = $region28
        $region27: #{tpu_custom_call.1} parent=11 // pred_region
          _
        $region28: #{tpu_custom_call.1} parent=11 // pred_fallthru
          _
      $region12: #{tpu_custom_call.1} parent=5 // pred_fallthru
        _
      %p180 = scmp.lt.s32.totalorder %s17, 2
      // Predicated region
      $region29: #{tpu_custom_call.1} parent=5 // pred_check
        %p181 = pneg %p180
      $region30: #{tpu_custom_call.1} parent=5 // pred_check_branch
        %183 = sbr.rel (%p181) target = $region32
      $region31: #{tpu_custom_call.1} parent=5 // pred_region
        // Predicated region
        $region33: #{tpu_custom_call.1} parent=31 // pred_check
          %p184 = pneg %p37
        $region34: #{tpu_custom_call.1} parent=31 // pred_check_branch
          %186 = sbr.rel (%p184) target = $region36
        $region35: #{tpu_custom_call.1} parent=31 // pred_region
          %s187 = sand.u32 %s27, 1
          %s188 = scalar_lea.sflag [#allocation3], %s187
          %s189 = sand.u32 %s27, 1
          %s190 = smul.addr %s189, 32
          %s191 = scalar_lea.vmem [#allocation2], %s190
          %193 = vsyncadd %s188, 0
          %s194 = smul.addr %s17, 4
          %s195 = smul.addr %s194, 8
          %s196 = scalar_lea.hbm %s0, %s195
          %s197 = sshll.u32 %s196, 4
          %s198 = int_to_ptr.hbm [resolvable:$true] %s197
          %s199 = sshll.u32 %s191, 4
          %s200 = int_to_ptr.vmem [resolvable:$true] %s199
          %205 = dma.hbm_to_vmem [thread:$0]  %s198, 512, %s200, %s188, 256, 256, 16
        $region36: #{tpu_custom_call.1} parent=31 // pred_fallthru
          _
      $region32: #{tpu_custom_call.1} parent=5 // pred_fallthru
        _
      %p206 = scmp.le.s32.totalorder 1, %s17
      %p207 = scmp.lt.s32.totalorder %s17, 3
      %p208 = pnand %p206, %p207
      %p209 = pneg %p208
      // Predicated region
      $region37: #{tpu_custom_call.1} parent=5 // pred_check
        _
      $region38: #{tpu_custom_call.1} parent=5 // pred_check_branch
        %211 = sbr.rel (%p208) target = $region40
      $region39: #{tpu_custom_call.1} parent=5 // pred_region
        %s212 = ssub.s32 %s17, 1
        %s213 = sand.u32 %s30, 1
        %s214 = scalar_lea.sflag [#allocation3], %s213
        %s215 = sand.u32 %s30, 1
        %s216 = smul.addr %s215, 32
        %s217 = scalar_lea.vmem [#allocation2], %s216
        // Predicated region
        $region41: #{tpu_custom_call.1} parent=39 // pred_check
          %p218 = pneg %p43
        $region42: #{tpu_custom_call.1} parent=39 // pred_check_branch
          %220 = sbr.rel (%p218) target = $region44
        $region43: #{tpu_custom_call.1} parent=39 // pred_region
          %222 = dma.done %s214, 512
        $region44: #{tpu_custom_call.1} parent=39 // pred_fallthru
          _
        %s223 = sand.u32 %s30, 1
        %s224 = scalar_lea.sflag [#allocation3], %s223
        %s225 = sand.u32 %s30, 1
        %s226 = smul.addr %s225, 32
        %s227 = scalar_lea.vmem [#allocation2], %s226
        %p228 = pneg %p43
        %p229 = pneg %p40
        %p230 = pneg %p64
        %p231 = pneg %p61
        %p232 = pneg %p85
        %p233 = pneg %p82
        %p234 = pneg %p106
        %p235 = pneg %p103
        %p236 = pneg %p127
        %p237 = pneg %p124
        %p238 = pneg %p153
        %p239 = pneg %p150
        %s240 = sand.u32 %s140, 1
        %s241 = scalar_lea.sflag [#allocation4], %s240
        %s242 = sand.u32 %s140, 1
        %s243 = smul.addr %s242, 32
        %s244 = scalar_lea.vmem [#allocation5], %s243
        %v245 = vld [vmem:[%s217] sm:$0xff]
        %v246 = vld [vmem:[%s217 + $0x8] sm:$0xff]
        %v247 = vld [vmem:[%s217 + $0x10] sm:$0xff]
        %v248 = vld [vmem:[%s217 + $0x18] sm:$0xff]
        %v249 = vadd.f32 %v245, %v246
        %250 = vadd.xlane.f32.xlu0 %v249
        %v251 = vpop.xlane.xlu0 %250
        %v252 = vadd.f32 %v247, %v248
        %253 = vadd.xlane.f32.xlu0 %v252
        %v254 = vpop.xlane.xlu0 %253
        %v255 = vmul.f32 %v251, 0.00390625
        %v256 = vmul.f32 %v254, 0.00390625
        %v257 = vld [vmem:[%s1] sm:$0xff]
        %v258 = vld [vmem:[%s1 + $0x8] sm:$0xff]
        %v259 = vld [vmem:[%s2] sm:$0x1]
        %v260 = vld [vmem:[%s3] sm:$0xf]
        %v261 = vld [vmem:[%s4] sm:$0x1]
        %v264 = vlaneseq
        %v265 = vand.u32 %v264, 127
        %v266 = vperm.slane %v255, %v265
        %v267 = vadd.s32 %v265, 4294967288
        %v268 = vperm.slane %v256, %v267
        %vm269 = vcmask 130112
        %v270 = vsel %vm269, %v268, %v266
        %vm271 = vcmask 130048
        %v272 = vsel %vm271, %v270, 0
        %274 = vmatpush.msra.mxu0 0.0
        %275 = vmatpush.msra.mxu0 0.0
        %276 = vmatpush.msra.mxu0 0.0
        %277 = vmatpush.msra.mxu0 0.0
        %278 = vmatpush.msra.mxu0 0.0
        %279 = vmatpush.msra.mxu0 0.0
        %280 = vmatpush.msra.mxu0 0.0
        %281 = vmatpush.msra.mxu0 0.0
        %282 = vmatpush.msra.mxu0 0.0
        %283 = vmatpush.msra.mxu0 0.0
        %284 = vmatpush.msra.mxu0 0.0
        %285 = vmatpush.msra.mxu0 0.0
        %286 = vmatpush.msra.mxu0 0.0
        %287 = vmatpush.msra.mxu0 0.0
        %288 = vmatpush.msra.mxu0 %v258
        %289 = vmatpush.msra.mxu0 %v257
        %290 = vmatmul.f32.gmra.mxu0 %v272
        %v291 = vpop.f32.mrf.mxu0
        %v292 = vadd.f32 %v259, %v291
        %293 = vdwg.mxu0
        %v294 = vmax.f32 %v292, 0.0
        %vm295 = vcmask 31744
        %v297 = vsel %vm295, %v294, 0
        %vm299 = vcmask 1043456
        %v301 = vsel %vm299, %v260, 0
        %303 = vmatpush.msra.mxu0 0.0
        %304 = vmatpush.msra.mxu0 0.0
        %305 = vmatpush.msra.mxu0 0.0
        %306 = vmatpush.msra.mxu0 0.0
        %307 = vmatpush.msra.mxu0 0.0
        %308 = vmatpush.msra.mxu0 0.0
        %309 = vmatpush.msra.mxu0 0.0
        %310 = vmatpush.msra.mxu0 0.0
        %311 = vmatpush.msra.mxu0 0.0
        %312 = vmatpush.msra.mxu0 0.0
        %313 = vmatpush.msra.mxu0 0.0
        %314 = vmatpush.msra.mxu0 0.0
        %315 = vmatpush.msra.mxu0 0.0
        %316 = vmatpush.msra.mxu0 0.0
        %317 = vmatpush.msra.mxu0 0.0
        %318 = vmatpush.msra.mxu0 %v301
        %319 = vmatmul.f32.gmra.mxu0 %v297
        %v320 = vpop.f32.mrf.mxu0
        %v321 = vadd.f32 %v261, %v320
        %322 = vdwg.mxu0
        %v323 = vxor.u32 %v321, 2147483648
        %v324 = vmul.f32 %v323, 1.442695
        %v325 = vpow.pop %v324
        %v326 = vadd.f32 %v325, 1.0
        %v327 = vrcp.pop %v326
        %v328 = vmul.f32 %v326, %v327
        %v329 = vsub.f32 1.0, %v328
        %v330 = vmul.f32 %v327, %v329
        %v331 = vadd.f32 %v327, %v330
        %vm332 = vweird.f32 %v326
        %vm333 = vweird.f32 %v327
        %vm334 = vmor %vm332, %vm333
        %v335 = vsel %vm334, %v327, %v331
        %v336 = vand.u32 2147483647, %v326
        %vm337 = vcmp.eq.f32.partialorder %v336, 8.507059e+37
        %v338 = vand.u32 %v326, 2147483648
        %v339 = vor.u32 1.1754944e-38, %v338
        %v340 = vsel %vm337, %v339, %v335
        %v341 = vmul.f32 1.0, %v340
        %v342 = vperm.slane %v341, 0
        %v343 = vlaneseq
        %v344 = vshrl.u32 %v343, 7
        %346 = vset.pattern.permute.xlu0 %v344
        %347 = vperm.xlu0 %346, %v342
        %v348 = vpop.permute.xlu0 %347
        %v349 = vlaneseq
        %v350 = vshrl.u32 %v349, 7
        %v351 = vadd.s32 %v350, 8
        %352 = vset.pattern.permute.xlu0 %v351
        %353 = vperm.xlu0 %352, %v342
        %v354 = vpop.permute.xlu0 %353
        %v355 = vmul.f32 %v245, %v348
        %v356 = vmul.f32 %v246, %v348
        %v357 = vmul.f32 %v247, %v354
        %v358 = vmul.f32 %v248, %v354
        %359 = vst [vmem:[%s244] sm:$0xff] %v355
        %360 = vst [vmem:[%s244 + $0x8] sm:$0xff] %v356
        %361 = vst [vmem:[%s244 + $0x10] sm:$0xff] %v357
        %362 = vst [vmem:[%s244 + $0x18] sm:$0xff] %v358
        %s363 = sand.u32 %s140, 1
        %s364 = scalar_lea.sflag [#allocation4], %s363
        %s365 = sand.u32 %s140, 1
        %s366 = smul.addr %s365, 32
        %s367 = scalar_lea.vmem [#allocation5], %s366
        // Predicated region
        $region45: #{tpu_custom_call.1} parent=39 // pred_check
          %p368 = pneg %p150
        $region46: #{tpu_custom_call.1} parent=39 // pred_check_branch
          %370 = sbr.rel (%p368) target = $region48
        $region47: #{tpu_custom_call.1} parent=39 // pred_region
          %372 = vsyncadd %s364, 0
          %s373 = smul.addr %s22, 4
          %s374 = smul.addr %s373, 8
          %s375 = scalar_lea.hbm %s5, %s374
          %s376 = sshll.u32 %s367, 4
          %s377 = int_to_ptr.vmem [resolvable:$true] %s376
          %s378 = sshll.u32 %s375, 4
          %s379 = int_to_ptr.hbm [resolvable:$true] %s378
          %384 = dma.vmem_to_hbm [thread:$0]  %s377, 512, %s379, %s364, 256, 256, 16
        $region48: #{tpu_custom_call.1} parent=39 // pred_fallthru
          _
      $region40: #{tpu_custom_call.1} parent=5 // pred_fallthru
        _
      %p385 = scmp.le.s32.totalorder 2, %s17
      // Predicated region
      $region49: #{tpu_custom_call.1} parent=5 // pred_check
        %p386 = pneg %p385
      $region50: #{tpu_custom_call.1} parent=5 // pred_check_branch
        %388 = sbr.rel (%p386) target = $region52
      $region51: #{tpu_custom_call.1} parent=5 // pred_region
        %s389 = ssub.s32 %s17, 2
        // Predicated region
        $region53: #{tpu_custom_call.1} parent=51 // pred_check
          %p390 = pneg %p156
        $region54: #{tpu_custom_call.1} parent=51 // pred_check_branch
          %392 = sbr.rel (%p390) target = $region56
        $region55: #{tpu_custom_call.1} parent=51 // pred_region
          %s393 = sand.u32 %s141, 1
          %s394 = scalar_lea.sflag [#allocation4], %s393
          %s395 = sand.u32 %s141, 1
          %s396 = smul.addr %s395, 32
          %s397 = scalar_lea.vmem [#allocation5], %s396
          %399 = dma.done %s394, 512
        $region56: #{tpu_custom_call.1} parent=51 // pred_fallthru
          _
      $region52: #{tpu_custom_call.1} parent=5 // pred_fallthru
        _
    $region6: #{tpu_custom_call.1} parent=1 // loop_footer
      %s21 = sadd.s32 1, %s17
    $region7: #{tpu_custom_call.1} parent=1 // loop_footer_branch
      %16 = sbr.rel target = $region3
    $region8: #{tpu_custom_call.1} parent=1 // loop_exit
      _
    %400 = vsyncpa [#allocation3], 1
    %s401 = scalar_lea.sflag [#allocation3], 1
    %402 = vsyncpa %s401, 1
    %403 = vsyncpa [#allocation4], 1
    %s404 = scalar_lea.sflag [#allocation4], 1
    %405 = vsyncpa %s404, 1

</llo_original>
